<compile_context>
chip_gen: v7x
topology: tpu7x:2x2x1
jax: 0.10.0
libtpu: 0.0.40
codegen_flags: <defaults>
</compile_context>

<pallas_src>
import jax
import jax.numpy as jnp
import numpy as np
from jax.experimental import pallas as pl
from jax.experimental.pallas import tpu as pltpu

# ---------------- configuration (small, consistent with the module) ---------
B = 2                 # batch
H = 8                 # horizon
OBS_DIM = 16
COND_DIM = 16
D = OBS_DIM + COND_DIM          # feature width fed to denoise_fn (32)
HID = 32                        # hidden width of the synthetic denoise_fn
NUM_TIMESTEPS = 1000
LOSS_TYPE = "l1"

BH = B * H                      # rows after folding batch into the sublane axis
D_PAD = 128                     # lane-dense feature width
HID_PAD = 128                   # lane-dense hidden width
N_PLANES = 6                    # x, noise, temb+b1, b2, c1, c2
INV_COUNT = 1.0 / float(B * H * OBS_DIM)   # F.l1_loss mean over (B,H,obs_dim)


# ---------------- diffusion schedule (plain JAX, buffer setup) --------------
def cosine_beta_schedule(timesteps, s=0.008):
    steps = timesteps + 1
    x = jnp.linspace(0.0, timesteps, steps, dtype=jnp.float32)
    alphas_cumprod = jnp.cos((x / timesteps + s) / (1 + s) * jnp.pi * 0.5) ** 2
    alphas_cumprod = alphas_cumprod / alphas_cumprod[0]
    betas = 1.0 - alphas_cumprod[1:] / alphas_cumprod[:-1]
    return jnp.clip(betas, 0.0, 0.9999)


def make_buffers(timesteps):
    betas = cosine_beta_schedule(timesteps)
    alphas = 1.0 - betas
    alphas_cumprod = jnp.cumprod(alphas, axis=0)
    return {
        "sqrt_alphas_cumprod": jnp.sqrt(alphas_cumprod).astype(jnp.float32),
        "sqrt_one_minus_alphas_cumprod":
            jnp.sqrt(1.0 - alphas_cumprod).astype(jnp.float32),
    }


# ---------------- synthetic denoise_fn time embedding (glue) ----------------
def time_embedding(diffusion_time, traj_time, hid=HID):
    # TODO(synk): the real T-DGR denoise_fn is an external nn.Module; this is a
    # representative sinusoidal embedding for the synthetic 2-layer MLP.
    half = hid // 2
    freqs = jnp.exp(-jnp.log(10000.0) * jnp.arange(half, dtype=jnp.float32) / half)
    a = diffusion_time.astype(jnp.float32)[:, None] * freqs[None, :]
    b = traj_time.astype(jnp.float32)[:, None] * freqs[None, :]
    return jnp.concatenate([jnp.sin(a), jnp.cos(b)], axis=-1)     # (B, HID)


# ---------------- Pallas kernel ---------------------------------------------
def diffusion_loss_kernel(slab_ref, w_ref, loss_ref):
    # slab planes: 0=x, 1=noise, 2=temb+b1, 3=b2, 4=c1, 5=c2   (BH, D_PAD) f32
    x       = slab_ref[0]
    noise   = slab_ref[1]
    temb_b1 = slab_ref[2]
    b2      = slab_ref[3]
    c1      = slab_ref[4]
    c2      = slab_ref[5]

    # obs-column mask regenerated in-kernel (free VALU filler, saves one DMA
    # stream + an 8 KB HBM constant).
    col = jax.lax.broadcasted_iota(jnp.int32, (BH, D_PAD), 1)
    obs = col < OBS_DIM

    # q_sample on obs columns, pass-through of task_cond elsewhere:
    #   obs cols:  c1*x + c2*noise   (noise is zero outside obs cols)
    #   other:     x
    x_noisy = x + jnp.where(obs, (c1 - 1.0) * x + c2 * noise, 0.0)

    # synthetic denoise_fn: 2-layer MLP with additive time embedding.
    # MXU matmuls take bf16 inputs with f32 accumulation; elementwise stays f32.
    w1 = w_ref[0]                      # (D_PAD, HID_PAD) bf16
    w2 = w_ref[1]                      # (HID_PAD, D_PAD) bf16
    h = jnp.dot(x_noisy.astype(jnp.bfloat16), w1,
                preferred_element_type=jnp.float32)
    h = jnp.tanh(h + temb_b1)          # b1 pre-folded into temb plane
    pred = jnp.dot(h.astype(jnp.bfloat16), w2,
                   preferred_element_type=jnp.float32) + b2

    # L1 loss mean over obs columns; the mean scale is folded in here so the
    # wrapper has no trailing divide.  Single store of the scalar result.
    err = jnp.where(obs, jnp.abs(noise - pred), 0.0)
    per_lane = jnp.sum(err, axis=0, keepdims=True)          # (1, D_PAD)
    loss_ref[...] = jnp.sum(per_lane, axis=1, keepdims=True) * INV_COUNT


# ---------------- wrapper: glue + pallas_call --------------------------------
def _prepare_kernel_inputs(buffers, params, x_full, traj_time, key):
    """Layout plumbing / RNG / gathers (plain JAX): builds the (6, BH, 128) slab."""
    key_t, key_n = jax.random.split(key)

    # diffusion_time = torch.randint(0, num_timesteps, (b,))
    diffusion_time = jax.random.randint(key_t, (B,), 0, NUM_TIMESTEPS,
                                        dtype=jnp.int32)
    # noise = torch.randn_like(x_start)  (obs_dim wide)
    noise_obs = jax.random.normal(key_n, (B, H, OBS_DIM), dtype=jnp.float32)

    # fold batch into rows, zero-pad feature axis to 128 lanes
    x_rows = x_full.reshape(BH, D)
    x_pad = jnp.pad(x_rows, ((0, 0), (0, D_PAD - D)))
    noise_pad = jnp.pad(noise_obs.reshape(BH, OBS_DIM),
                        ((0, 0), (0, D_PAD - OBS_DIM)))

    # extract(buffer, t, shape) -> per-row coefficients, lane-broadcast planes
    c1 = buffers["sqrt_alphas_cumprod"][diffusion_time]               # (B,)
    c2 = buffers["sqrt_one_minus_alphas_cumprod"][diffusion_time]     # (B,)
    c1_plane = jnp.broadcast_to(c1[:, None, None], (B, H, D_PAD)).reshape(BH, D_PAD)
    c2_plane = jnp.broadcast_to(c2[:, None, None], (B, H, D_PAD)).reshape(BH, D_PAD)

    # time embedding, padded to HID_PAD, replicated per row, b1 pre-added
    temb = time_embedding(diffusion_time, traj_time)                  # (B, HID)
    temb_pad = jnp.pad(temb, ((0, 0), (0, HID_PAD - HID)))
    temb_rows = jnp.broadcast_to(temb_pad[:, None, :],
                                 (B, H, HID_PAD)).reshape(BH, HID_PAD)
    temb_b1 = temb_rows + params["b1"]                                # (BH, HID_PAD)

    b2_plane = jnp.broadcast_to(params["b2"], (BH, D_PAD))

    slab = jnp.stack([x_pad, noise_pad, temb_b1, b2_plane, c1_plane, c2_plane],
                     axis=0).astype(jnp.float32)                      # (6, BH, D_PAD)
    return slab


def gaussian_diffusion_forward(buffers, params, x_full, traj_time, key):
    """Matches GaussianDiffusion.forward(x, traj_time): returns scalar L1 loss."""
    assert x_full.shape == (B, H, D)
    slab = _prepare_kernel_inputs(buffers, params, x_full, traj_time, key)

    # Single invocation: the whole problem (~112 KB) lives in VMEM; two input
    # DMA streams (data slab + weight slab), one scalar output.
    loss = pl.pallas_call(
        diffusion_loss_kernel,
        out_shape=jax.ShapeDtypeStruct((1, 1), jnp.float32),
        grid_spec=pl.GridSpec(
            grid=(1,),
            in_specs=[
                pl.BlockSpec((N_PLANES, BH, D_PAD), lambda i: (0, 0, 0)),   # slab
                pl.BlockSpec((2, D_PAD, HID_PAD), lambda i: (0, 0, 0)),     # weights
            ],
            out_specs=pl.BlockSpec((1, 1), lambda i: (0, 0)),               # loss
        ),
        compiler_params=pltpu.CompilerParams(
            dimension_semantics=("arbitrary",)),
    )(slab, params["w_stack"])

    return loss[0, 0]


def reference_forward(buffers, params, x_full, traj_time, key):
    """Pure-JAX reference of the same fused math (debug/verification only)."""
    slab = _prepare_kernel_inputs(buffers, params, x_full, traj_time, key)
    x, noise, temb_b1, b2, c1, c2 = (slab[i] for i in range(N_PLANES))
    obs = (jnp.arange(D_PAD) < OBS_DIM)[None, :]
    x_noisy = x + jnp.where(obs, (c1 - 1.0) * x + c2 * noise, 0.0)
    w = params["w_stack"]
    h = jnp.tanh(jnp.dot(x_noisy.astype(jnp.bfloat16), w[0],
                         preferred_element_type=jnp.float32) + temb_b1)
    pred = jnp.dot(h.astype(jnp.bfloat16), w[1],
                   preferred_element_type=jnp.float32) + b2
    err = jnp.where(obs, jnp.abs(noise - pred), 0.0)
    return jnp.sum(err) * INV_COUNT


# ---------------- deterministic parameter init (synthetic denoise_fn) -------
def init_params(key):
    k1, k2, k3, k4 = jax.random.split(key, 4)
    w1 = 0.1 * jax.random.normal(k1, (D, HID), dtype=jnp.float32)
    b1 = 0.01 * jax.random.normal(k2, (HID,), dtype=jnp.float32)
    w2 = 0.1 * jax.random.normal(k3, (HID, D), dtype=jnp.float32)
    b2 = 0.01 * jax.random.normal(k4, (D,), dtype=jnp.float32)
    # zero-padded, lane-dense parameters; weights stacked & pre-cast to bf16.
    w1_pad = jnp.zeros((D_PAD, HID_PAD), jnp.float32).at[:D, :HID].set(w1)
    w2_pad = jnp.zeros((HID_PAD, D_PAD), jnp.float32).at[:HID, :D].set(w2)
    b1_pad = jnp.zeros((1, HID_PAD), jnp.float32).at[0, :HID].set(b1)
    b2_pad = jnp.zeros((1, D_PAD), jnp.float32).at[0, :D].set(b2)
    w_stack = jnp.stack([w1_pad, w2_pad], axis=0).astype(jnp.bfloat16)  # (2,128,128)
    return {"w_stack": w_stack, "b1": b1_pad, "b2": b2_pad}


if __name__ == "__main__":
    root = jax.random.PRNGKey(0)
    k_x, k_tt, k_p, k_fwd = jax.random.split(root, 4)

    x = jax.random.normal(k_x, (B, H, D), dtype=jnp.float32)   # (b, h, obs+cond)
    traj_time = jax.random.randint(k_tt, (B,), 0, 100, dtype=jnp.int32)

    buffers = make_buffers(NUM_TIMESTEPS)
    params = init_params(k_p)

    fwd = jax.jit(gaussian_diffusion_forward)
    ref = jax.jit(reference_forward)

    loss = jax.block_until_ready(fwd(buffers, params, x, traj_time, k_fwd))
    ref_loss = jax.block_until_ready(ref(buffers, params, x, traj_time, k_fwd))

    assert np.isfinite(float(loss))
    np.testing.assert_allclose(float(loss), float(ref_loss), rtol=5e-3, atol=1e-4)
    print("KERNEL_OK")
</pallas_src>

<mosaic_0001>
module attributes {stable_mosaic.version = 11 : i64} {
  func.func @diffusion_loss_kernel(%arg0: i32, %arg1: memref<6x16x128xf32, #tpu.memory_space<vmem>>, %arg2: memref<2x128x128xbf16, #tpu.memory_space<vmem>>, %arg3: memref<1x1xf32, #tpu.memory_space<vmem>>) attributes {dimension_semantics = [#tpu.dimension_semantics<arbitrary>], iteration_bounds = array<i64: 1>, scalar_prefetch = 0 : i64, scratch_operands = 0 : i64, tpu.core_type = #tpu.core_type<tc>, window_params = [{pipeline_mode = #tpu.pipeline_mode<synchronous>, transform_indices = @transform_0, window_bounds = array<i64: 6, 16, 128>}, {pipeline_mode = #tpu.pipeline_mode<synchronous>, transform_indices = @transform_1, window_bounds = array<i64: 2, 128, 128>}, {pipeline_mode = #tpu.pipeline_mode<synchronous>, transform_indices = @transform_2, window_bounds = array<i64: 1, 1>}]} {
    %c0 = arith.constant 0 : index
    %c0_0 = arith.constant 0 : index
    %c0_1 = arith.constant 0 : index
    %0 = vector.load %arg1[%c0, %c0_0, %c0_1] : memref<6x16x128xf32, #tpu.memory_space<vmem>>, vector<1x16x128xf32>
    %1 = vector.shape_cast %0 : vector<1x16x128xf32> to vector<16x128xf32>
    %c1 = arith.constant 1 : index
    %c0_2 = arith.constant 0 : index
    %c0_3 = arith.constant 0 : index
    %2 = vector.load %arg1[%c1, %c0_2, %c0_3] : memref<6x16x128xf32, #tpu.memory_space<vmem>>, vector<1x16x128xf32>
    %3 = vector.shape_cast %2 : vector<1x16x128xf32> to vector<16x128xf32>
    %c2 = arith.constant 2 : index
    %c0_4 = arith.constant 0 : index
    %c0_5 = arith.constant 0 : index
    %4 = vector.load %arg1[%c2, %c0_4, %c0_5] : memref<6x16x128xf32, #tpu.memory_space<vmem>>, vector<1x16x128xf32>
    %5 = vector.shape_cast %4 : vector<1x16x128xf32> to vector<16x128xf32>
    %c3 = arith.constant 3 : index
    %c0_6 = arith.constant 0 : index
    %c0_7 = arith.constant 0 : index
    %6 = vector.load %arg1[%c3, %c0_6, %c0_7] : memref<6x16x128xf32, #tpu.memory_space<vmem>>, vector<1x16x128xf32>
    %7 = vector.shape_cast %6 : vector<1x16x128xf32> to vector<16x128xf32>
    %c4 = arith.constant 4 : index
    %c0_8 = arith.constant 0 : index
    %c0_9 = arith.constant 0 : index
    %8 = vector.load %arg1[%c4, %c0_8, %c0_9] : memref<6x16x128xf32, #tpu.memory_space<vmem>>, vector<1x16x128xf32>
    %9 = vector.shape_cast %8 : vector<1x16x128xf32> to vector<16x128xf32>
    %c5 = arith.constant 5 : index
    %c0_10 = arith.constant 0 : index
    %c0_11 = arith.constant 0 : index
    %10 = vector.load %arg1[%c5, %c0_10, %c0_11] : memref<6x16x128xf32, #tpu.memory_space<vmem>>, vector<1x16x128xf32>
    %11 = vector.shape_cast %10 : vector<1x16x128xf32> to vector<16x128xf32>
    %12 = tpu.iota {dimensions = array<i32: 1>} : vector<16x128xi32>
    %c16_i32 = arith.constant 16 : i32
    %13 = vector.broadcast %c16_i32 : i32 to vector<16x128xi32>
    %14 = arith.cmpi slt, %12, %13 : vector<16x128xi32>
    %cst = arith.constant 1.000000e+00 : f32
    %15 = vector.broadcast %cst : f32 to vector<16x128xf32>
    %16 = arith.subf %9, %15 : vector<16x128xf32>
    %17 = arith.mulf %16, %1 : vector<16x128xf32>
    %18 = arith.mulf %11, %3 : vector<16x128xf32>
    %19 = arith.addf %17, %18 : vector<16x128xf32>
    %cst_12 = arith.constant 0.000000e+00 : f32
    %20 = vector.broadcast %cst_12 : f32 to vector<16x128xf32>
    %21 = arith.select %14, %19, %20 : vector<16x128xi1>, vector<16x128xf32>
    %22 = arith.addf %1, %21 : vector<16x128xf32>
    %c0_13 = arith.constant 0 : index
    %c0_14 = arith.constant 0 : index
    %c0_15 = arith.constant 0 : index
    %23 = vector.load %arg2[%c0_13, %c0_14, %c0_15] : memref<2x128x128xbf16, #tpu.memory_space<vmem>>, vector<1x128x128xbf16>
    %24 = vector.shape_cast %23 : vector<1x128x128xbf16> to vector<128x128xbf16>
    %c1_16 = arith.constant 1 : index
    %c0_17 = arith.constant 0 : index
    %c0_18 = arith.constant 0 : index
    %25 = vector.load %arg2[%c1_16, %c0_17, %c0_18] : memref<2x128x128xbf16, #tpu.memory_space<vmem>>, vector<1x128x128xbf16>
    %26 = vector.shape_cast %25 : vector<1x128x128xbf16> to vector<128x128xbf16>
    %27 = arith.truncf %22 : vector<16x128xf32> to vector<16x128xbf16>
    %cst_19 = arith.constant dense<0.000000e+00> : vector<16x128xf32>
    %28 = tpu.matmul %27, %24, %cst_19 {dimension_numbers = #tpu.dot_dimension_numbers<[1], [0], [0], [1], [0, 0, 1, 1], [], []>} : vector<16x128xbf16>, vector<128x128xbf16>, vector<16x128xf32> -> vector<16x128xf32>
    %29 = arith.addf %28, %5 : vector<16x128xf32>
    %30 = math.tanh %29 : vector<16x128xf32>
    %31 = arith.truncf %30 : vector<16x128xf32> to vector<16x128xbf16>
    %cst_20 = arith.constant dense<0.000000e+00> : vector<16x128xf32>
    %32 = tpu.matmul %31, %26, %cst_20 {dimension_numbers = #tpu.dot_dimension_numbers<[1], [0], [0], [1], [0, 0, 1, 1], [], []>} : vector<16x128xbf16>, vector<128x128xbf16>, vector<16x128xf32> -> vector<16x128xf32>
    %33 = arith.addf %32, %7 : vector<16x128xf32>
    %34 = arith.subf %3, %33 : vector<16x128xf32>
    %35 = math.absf %34 : vector<16x128xf32>
    %cst_21 = arith.constant 0.000000e+00 : f32
    %36 = vector.broadcast %cst_21 : f32 to vector<16x128xf32>
    %37 = arith.select %14, %35, %36 : vector<16x128xi1>, vector<16x128xf32>
    %cst_22 = arith.constant dense<0.000000e+00> : vector<128xf32>
    %38 = vector.multi_reduction <add>, %37, %cst_22 [0] : vector<16x128xf32> to vector<128xf32>
    %39 = vector.shape_cast %38 : vector<128xf32> to vector<1x128xf32>
    %cst_23 = arith.constant dense<0.000000e+00> : vector<1xf32>
    %40 = vector.multi_reduction <add>, %39, %cst_23 [1] : vector<1x128xf32> to vector<1xf32>
    %41 = vector.shape_cast %40 : vector<1xf32> to vector<1x1xf32>
    %cst_24 = arith.constant 3.906250e-03 : f32
    %42 = vector.broadcast %cst_24 : f32 to vector<1x1xf32>
    %43 = arith.mulf %41, %42 : vector<1x1xf32>
    %c0_25 = arith.constant 0 : index
    %c0_26 = arith.constant 0 : index
    %44 = vector.load %arg3[%c0_25, %c0_26] : memref<1x1xf32, #tpu.memory_space<vmem>>, vector<1x1xf32>
    tpu.vector_store %arg3[%c0_25, %c0_26], %43 {strides = array<i32>} : memref<1x1xf32, #tpu.memory_space<vmem>>, vector<1x1xf32>,
    return
  }
  func.func @transform_0(%arg0: i32) -> (i32, i32, i32) {
    %c0_i32 = arith.constant 0 : i32
    %c0_i32_0 = arith.constant 0 : i32
    %c0_i32_1 = arith.constant 0 : i32
    %c0_i32_2 = arith.constant 0 : i32
    return %c0_i32, %c0_i32_0, %c0_i32_1 : i32, i32, i32
  }
  func.func @transform_1(%arg0: i32) -> (i32, i32, i32) {
    %c0_i32 = arith.constant 0 : i32
    %c0_i32_0 = arith.constant 0 : i32
    %c0_i32_1 = arith.constant 0 : i32
    %c0_i32_2 = arith.constant 0 : i32
    return %c0_i32, %c0_i32_0, %c0_i32_1 : i32, i32, i32
  }
  func.func @transform_2(%arg0: i32) -> (i32, i32) {
    %c0_i32 = arith.constant 0 : i32
    %c0_i32_0 = arith.constant 0 : i32
    %c0_i32_1 = arith.constant 0 : i32
    return %c0_i32, %c0_i32_0 : i32, i32
  }
}

</mosaic_0001>

<llo_original>
// kernel: gaussian_diffusion_forward.1
$region0: #{gaussian_diffusion_forward.1}
  #allocation0 [shape = 'u32[]', space=smem, size = 0x4, offset = 0x4, fixed_abs, tag = 'smem constant byte address 0x4 - core index']
  #allocation1 [shape = 'u32[144,128]{1,0:T(1,128)}', space=vmem, size = 0x12000, scoped, tag = 'internal scratch']
  %s0 = inlined_call_operand.vmem [shape: f32[6,16,128], index: 0, kind: input, shape index: {}]
  %s1 = inlined_call_operand.vmem [shape: bf16[2,128,128], index: 1, kind: input, shape index: {}]
  %s2 = inlined_call_operand.hbm [shape: f32[1,1], index: 2, kind: output, shape index: {}]
  %s3 = sld [smem:[#allocation0]]
  $region18: #{gaussian_diffusion_forward.1} parent=0
    _
  %s5 = ssub.s32 1, %s3
  %s6 = scalar_select 0, %s5, %s3
  $region1: #{gaussian_diffusion_forward.1} parent=0
    #allocation2 [shape = 'u8[512]{0}', space=vmem, size = 0x400, scoped, tag = 'output window, operand 0, single buffered']
    #allocation3 [shape = 's32[1]{0}', space=sflag, size = 0x4, scoped, tag = 'scoped memory for gaussian_diffusion_forward.1']
    %7 = vsyncpa [#allocation3], 0
    // Predicated region
    $region2: #{gaussian_diffusion_forward.1} parent=1 // pred_check
      _
    $region3: #{gaussian_diffusion_forward.1} parent=1 // pred_check_branch
      %9 = sbr.rel (0) target = $region5
    $region4: #{gaussian_diffusion_forward.1} parent=1 // pred_region
      _
    $region5: #{gaussian_diffusion_forward.1} parent=1 // pred_fallthru
      _
    // Predicated region
    $region6: #{gaussian_diffusion_forward.1} parent=1 // pred_check
      _
    $region7: #{gaussian_diffusion_forward.1} parent=1 // pred_check_branch
      %11 = sbr.rel (0) target = $region9
    $region8: #{gaussian_diffusion_forward.1} parent=1 // pred_region
      _
    $region9: #{gaussian_diffusion_forward.1} parent=1 // pred_fallthru
      _
    %v13 = vld [vmem:[%s0] sm:$0xff]
    %v14 = vld [vmem:[%s0 + $0x8] sm:$0xff]
    %s15 = scalar_lea.vmem %s0, 16
    %v16 = vld [vmem:[%s15] sm:$0xff]
    %v17 = vld [vmem:[%s15 + $0x8] sm:$0xff]
    %s18 = scalar_lea.vmem %s0, 32
    %v19 = vld [vmem:[%s18] sm:$0xff]
    %v20 = vld [vmem:[%s18 + $0x8] sm:$0xff]
    %s21 = scalar_lea.vmem %s0, 48
    %v22 = vld [vmem:[%s21] sm:$0xff]
    %v23 = vld [vmem:[%s21 + $0x8] sm:$0xff]
    %s24 = scalar_lea.vmem %s0, 64
    %v25 = vld [vmem:[%s24] sm:$0xff]
    %v26 = vld [vmem:[%s24 + $0x8] sm:$0xff]
    %s27 = scalar_lea.vmem %s0, 80
    %v28 = vld [vmem:[%s27] sm:$0xff]
    %v29 = vld [vmem:[%s27 + $0x8] sm:$0xff]
    %v30 = vlaneseq
    %v31 = vand.u32 %v30, 127
    %vm32 = vcmp.lt.s32.totalorder %v31, 16
    %v33 = vsub.f32 %v25, 1.0
    %v34 = vsub.f32 %v26, 1.0
    %v35 = vmul.f32 %v33, %v13
    %v36 = vmul.f32 %v34, %v14
    %v37 = vmul.f32 %v28, %v16
    %v38 = vmul.f32 %v29, %v17
    %v39 = vadd.f32 %v35, %v37
    %v40 = vadd.f32 %v36, %v38
    %v41 = vsel %vm32, %v39, 0.0
    %v42 = vsel %vm32, %v40, 0.0
    %v43 = vadd.f32 %v13, %v41
    %v44 = vadd.f32 %v14, %v42
    %v45 = vld [vmem:[%s1] sm:$0xf]
    %v46 = vld [vmem:[%s1 + $0x4] sm:$0xf]
    %v47 = vld [vmem:[%s1 + $0x8] sm:$0xf]
    %v48 = vld [vmem:[%s1 + $0xc] sm:$0xf]
    %v49 = vld [vmem:[%s1 + $0x10] sm:$0xf]
    %v50 = vld [vmem:[%s1 + $0x14] sm:$0xf]
    %v51 = vld [vmem:[%s1 + $0x18] sm:$0xf]
    %v52 = vld [vmem:[%s1 + $0x1c] sm:$0xf]
    %v53 = vld [vmem:[%s1 + $0x20] sm:$0xf]
    %v54 = vld [vmem:[%s1 + $0x24] sm:$0xf]
    %v55 = vld [vmem:[%s1 + $0x28] sm:$0xf]
    %v56 = vld [vmem:[%s1 + $0x2c] sm:$0xf]
    %v57 = vld [vmem:[%s1 + $0x30] sm:$0xf]
    %v58 = vld [vmem:[%s1 + $0x34] sm:$0xf]
    %v59 = vld [vmem:[%s1 + $0x38] sm:$0xf]
    %v60 = vld [vmem:[%s1 + $0x3c] sm:$0xf]
    %s61 = scalar_lea.vmem %s1, 64
    %v62 = vld [vmem:[%s61] sm:$0xf]
    %v63 = vld [vmem:[%s61 + $0x4] sm:$0xf]
    %v64 = vld [vmem:[%s61 + $0x8] sm:$0xf]
    %v65 = vld [vmem:[%s61 + $0xc] sm:$0xf]
    %v66 = vld [vmem:[%s61 + $0x10] sm:$0xf]
    %v67 = vld [vmem:[%s61 + $0x14] sm:$0xf]
    %v68 = vld [vmem:[%s61 + $0x18] sm:$0xf]
    %v69 = vld [vmem:[%s61 + $0x1c] sm:$0xf]
    %v70 = vld [vmem:[%s61 + $0x20] sm:$0xf]
    %v71 = vld [vmem:[%s61 + $0x24] sm:$0xf]
    %v72 = vld [vmem:[%s61 + $0x28] sm:$0xf]
    %v73 = vld [vmem:[%s61 + $0x2c] sm:$0xf]
    %v74 = vld [vmem:[%s61 + $0x30] sm:$0xf]
    %v75 = vld [vmem:[%s61 + $0x34] sm:$0xf]
    %v76 = vld [vmem:[%s61 + $0x38] sm:$0xf]
    %v77 = vld [vmem:[%s61 + $0x3c] sm:$0xf]
    %v78 = vpack.c.bf16 %v44, %v43
    %v95 = vunpack.c.l.b16 %v45
    %v96 = vunpack.c.l.b16 %v46
    %v97 = vunpack.c.l.b16 %v47
    %v98 = vunpack.c.l.b16 %v48
    %v99 = vunpack.c.l.b16 %v49
    %v100 = vunpack.c.l.b16 %v50
    %v101 = vunpack.c.l.b16 %v51
    %v102 = vunpack.c.l.b16 %v52
    %v103 = vunpack.c.l.b16 %v53
    %v104 = vunpack.c.l.b16 %v54
    %v105 = vunpack.c.l.b16 %v55
    %v106 = vunpack.c.l.b16 %v56
    %v107 = vunpack.c.l.b16 %v57
    %v108 = vunpack.c.l.b16 %v58
    %v109 = vunpack.c.l.b16 %v59
    %v110 = vunpack.c.l.b16 %v60
    %v111 = vpack.c.b16 %v96, %v95
    %v112 = vpack.c.b16 %v98, %v97
    %v113 = vpack.c.b16 %v100, %v99
    %v114 = vpack.c.b16 %v102, %v101
    %v115 = vpack.c.b16 %v104, %v103
    %v116 = vpack.c.b16 %v106, %v105
    %v117 = vpack.c.b16 %v108, %v107
    %v118 = vpack.c.b16 %v110, %v109
    %127 = vmatprep.subr.bf16.mxu0 0
    %128 = vmatpush1.bf16.msra.mxu0 %v111
    %129 = vmatprep.subr.bf16.mxu0 0
    %130 = vmatpush1.bf16.msra.mxu0 %v112
    %131 = vmatprep.subr.bf16.mxu0 0
    %132 = vmatpush1.bf16.msra.mxu0 %v113
    %133 = vmatprep.subr.bf16.mxu0 0
    %134 = vmatpush1.bf16.msra.mxu0 %v114
    %135 = vmatprep.subr.bf16.mxu0 0
    %136 = vmatpush1.bf16.msra.mxu0 %v115
    %137 = vmatprep.subr.bf16.mxu0 0
    %138 = vmatpush1.bf16.msra.mxu0 %v116
    %139 = vmatprep.subr.bf16.mxu0 0
    %140 = vmatpush1.bf16.msra.mxu0 %v117
    %141 = vmatprep.subr.bf16.mxu0 0
    %142 = vmatpush1.bf16.msra.mxu0 %v118
    %143 = vmatprep.subr.bf16.mxu0 0
    %144 = vmatpush1.bf16.msra.mxu0 0
    %145 = vmatprep.subr.bf16.mxu0 0
    %146 = vmatpush1.bf16.msra.mxu0 0
    %147 = vmatprep.subr.bf16.mxu0 0
    %148 = vmatpush1.bf16.msra.mxu0 0
    %149 = vmatprep.subr.bf16.mxu0 0
    %150 = vmatpush1.bf16.msra.mxu0 0
    %151 = vmatprep.subr.bf16.mxu0 0
    %152 = vmatpush1.bf16.msra.mxu0 0
    %153 = vmatprep.subr.bf16.mxu0 0
    %154 = vmatpush1.bf16.msra.mxu0 0
    %155 = vmatprep.subr.bf16.mxu0 0
    %156 = vmatpush1.bf16.msra.mxu0 0
    %157 = vmatprep.subr.bf16.mxu0 0
    %158 = vmatpush1.bf16.msra.mxu0 0
    %159 = vmatprep.mubr.bf16.mxu0 0
    %160 = vmatmul.mubr.bf16.gmra.mrb[0].mxu0 %v78
    %v161 = vpop.f32.mrb[0].mxu0
    %v162 = vadd.f32 %v19, %v161
    %v163 = vpop.f32.mrb[0].mxu0
    %v164 = vpop.f32.mrb[0].mxu0
    %v165 = vadd.f32 %v20, %v164
    %v166 = vpop.f32.mrb[0].mxu0
    %167 = vdwg.mxu0
    %v168 = vtanh.pop %v162
    %v169 = vtanh.pop %v165
    %v170 = vpack.c.bf16 %v169, %v168
    %v187 = vunpack.c.l.b16 %v62
    %v188 = vunpack.c.l.b16 %v63
    %v189 = vunpack.c.l.b16 %v64
    %v190 = vunpack.c.l.b16 %v65
    %v191 = vunpack.c.l.b16 %v66
    %v192 = vunpack.c.l.b16 %v67
    %v193 = vunpack.c.l.b16 %v68
    %v194 = vunpack.c.l.b16 %v69
    %v195 = vunpack.c.l.b16 %v70
    %v196 = vunpack.c.l.b16 %v71
    %v197 = vunpack.c.l.b16 %v72
    %v198 = vunpack.c.l.b16 %v73
    %v199 = vunpack.c.l.b16 %v74
    %v200 = vunpack.c.l.b16 %v75
    %v201 = vunpack.c.l.b16 %v76
    %v202 = vunpack.c.l.b16 %v77
    %v203 = vpack.c.b16 %v188, %v187
    %v204 = vpack.c.b16 %v190, %v189
    %v205 = vpack.c.b16 %v192, %v191
    %v206 = vpack.c.b16 %v194, %v193
    %v207 = vpack.c.b16 %v196, %v195
    %v208 = vpack.c.b16 %v198, %v197
    %v209 = vpack.c.b16 %v200, %v199
    %v210 = vpack.c.b16 %v202, %v201
    %219 = vmatprep.subr.bf16.mxu0 0
    %220 = vmatpush1.bf16.msra.mxu0 %v203
    %221 = vmatprep.subr.bf16.mxu0 0
    %222 = vmatpush1.bf16.msra.mxu0 %v204
    %223 = vmatprep.subr.bf16.mxu0 0
    %224 = vmatpush1.bf16.msra.mxu0 %v205
    %225 = vmatprep.subr.bf16.mxu0 0
    %226 = vmatpush1.bf16.msra.mxu0 %v206
    %227 = vmatprep.subr.bf16.mxu0 0
    %228 = vmatpush1.bf16.msra.mxu0 %v207
    %229 = vmatprep.subr.bf16.mxu0 0
    %230 = vmatpush1.bf16.msra.mxu0 %v208
    %231 = vmatprep.subr.bf16.mxu0 0
    %232 = vmatpush1.bf16.msra.mxu0 %v209
    %233 = vmatprep.subr.bf16.mxu0 0
    %234 = vmatpush1.bf16.msra.mxu0 %v210
    %235 = vmatprep.subr.bf16.mxu0 0
    %236 = vmatpush1.bf16.msra.mxu0 0
    %237 = vmatprep.subr.bf16.mxu0 0
    %238 = vmatpush1.bf16.msra.mxu0 0
    %239 = vmatprep.subr.bf16.mxu0 0
    %240 = vmatpush1.bf16.msra.mxu0 0
    %241 = vmatprep.subr.bf16.mxu0 0
    %242 = vmatpush1.bf16.msra.mxu0 0
    %243 = vmatprep.subr.bf16.mxu0 0
    %244 = vmatpush1.bf16.msra.mxu0 0
    %245 = vmatprep.subr.bf16.mxu0 0
    %246 = vmatpush1.bf16.msra.mxu0 0
    %247 = vmatprep.subr.bf16.mxu0 0
    %248 = vmatpush1.bf16.msra.mxu0 0
    %249 = vmatprep.subr.bf16.mxu0 0
    %250 = vmatpush1.bf16.msra.mxu0 0
    %251 = vmatprep.mubr.bf16.mxu0 0
    %252 = vmatmul.mubr.bf16.gmra.mrb[0].mxu0 %v170
    %v253 = vpop.f32.mrb[0].mxu0
    %v254 = vadd.f32 %v22, %v253
    %v255 = vpop.f32.mrb[0].mxu0
    %v256 = vpop.f32.mrb[0].mxu0
    %v257 = vadd.f32 %v23, %v256
    %v258 = vpop.f32.mrb[0].mxu0
    %259 = vdwg.mxu0
    %v260 = vsub.f32 %v16, %v254
    %v261 = vsub.f32 %v17, %v257
    %v262 = vand.u32 2147483647, %v260
    %v263 = vand.u32 2147483647, %v261
    %v264 = vsel %vm32, %v262, 0.0
    %v265 = vsel %vm32, %v263, 0.0
    %v266 = vadd.f32 %v264, %v265
    %v267 = vrot.slane %v266, 4
    %v268 = vadd.f32 %v266, %v267
    %v269 = vrot.slane %v268, 2
    %v270 = vadd.f32 %v268, %v269
    %v271 = vrot.slane %v270, 1
    %v272 = vadd.f32 %v270, %v271
    %273 = vadd.xlane.f32.xlu0 %v272
    %v274 = vpop.xlane.xlu0 %273
    %v275 = vmul.f32 %v274, 0.00390625
    %vm276 = vcmask 0
    %277 = vst.msk [vmem:[#allocation2] sm:$0x1] %vm276, %v275
    // Predicated region
    $region10: #{gaussian_diffusion_forward.1} parent=1 // pred_check
      _
    $region11: #{gaussian_diffusion_forward.1} parent=1 // pred_check_branch
      %279 = sbr.rel (0) target = $region13
    $region12: #{gaussian_diffusion_forward.1} parent=1 // pred_region
      %s281 = ssub.s32 16, 16
      %282 = vsyncadd [#allocation3], %s281
      %s284 = sshll.u32 [#allocation2], 4
      %s285 = int_to_ptr.vmem [resolvable:$true] %s284
      %287 = dma.vmem_to_hbm [thread:$0]  %s285, 16, %s2, [#allocation3]
    $region13: #{gaussian_diffusion_forward.1} parent=1 // pred_fallthru
      _
    // Predicated region
    $region14: #{gaussian_diffusion_forward.1} parent=1 // pred_check
      _
    $region15: #{gaussian_diffusion_forward.1} parent=1 // pred_check_branch
      %289 = sbr.rel (0) target = $region17
    $region16: #{gaussian_diffusion_forward.1} parent=1 // pred_region
      %290 = dma.done [#allocation3], 16
    $region17: #{gaussian_diffusion_forward.1} parent=1 // pred_fallthru
      _
    %291 = vsyncpa [#allocation3], 1

</llo_original>
